<compile_context>
chip_gen: v7x
topology: tpu7x:2x2x1
jax: 0.10.0
libtpu: 0.0.40
codegen_flags: <defaults>
</compile_context>

<pallas_src>
import functools

import jax
import jax.numpy as jnp
from jax import lax
from jax.experimental import pallas as pl
from jax.experimental.pallas import tpu as pltpu

# ---- "param" module configuration, deterministic and in-script -------------
DIM = 32                  # entity embedding dim (even; relation dim = DIM//2)
GAMMA = 12.0
EPSILON = 2.0
NEG_PER_POS = 4
PI = 3.141592653589793


def rotate_embedding_range():
    # matches the usual KEnS/RotatE definition: (gamma + eps) / dim
    return (GAMMA + EPSILON) / DIM


def _log_sigmoid(x):
    # logsigmoid(x) = min(x, 0) - log1p(exp(-|x|))
    # exp/log stay on the EUP slot; no logaddexp max/select chain.
    return jnp.minimum(x, 0.0) - jnp.log1p(jnp.exp(-jnp.abs(x)))


def _kg_rotate_kernel(idx_ref, ent_ref, rel_ref, out_ref, *,
                      batch, neg, num_entity, num_relation):
    """Fused gather + RotatE + logsigmoid + loss reduction.

    idx_ref : (3B + B*NEG, 1) int32  rows = [head | tail | neg (NEG-major) | rel]
    ent_ref : (2, E, DIM/2) f32      [0] = real half, [1] = imag half
    rel_ref : (R, DIM/2)    f32
    out_ref : (1, 1)        f32 in SMEM (scalar loss)
    """
    ne = 2 * batch + batch * neg          # number of entity-index rows
    inv_range = PI / rotate_embedding_range()

    idx = idx_ref[...]                    # (ne + B, 1) int32
    ent_idx = idx[:ne, :]                 # (ne, 1)
    rel_idx = idx[ne:, :]                 # (B, 1)

    # ---- fused embedding gathers: one-hot @ table on the MXU ---------------
    e_iota = lax.broadcasted_iota(jnp.int32, (ne, num_entity), 1)
    onehot_e = (ent_idx == e_iota).astype(jnp.float32)          # (ne, E)
    g_re = jnp.dot(onehot_e, ent_ref[0], preferred_element_type=jnp.float32)
    g_im = jnp.dot(onehot_e, ent_ref[1], preferred_element_type=jnp.float32)

    r_iota = lax.broadcasted_iota(jnp.int32, (batch, num_relation), 1)
    onehot_r = (rel_idx == r_iota).astype(jnp.float32)          # (B, R)
    r = jnp.dot(onehot_r, rel_ref[...], preferred_element_type=jnp.float32)

    re_h, im_h = g_re[:batch], g_im[:batch]                     # (B, dh)
    re_t, im_t = g_re[batch:2 * batch], g_im[batch:2 * batch]   # (B, dh)
    re_n, im_n = g_re[2 * batch:], g_im[2 * batch:]             # (B*NEG, dh)

    # ---- RotatE rotation of the head ----------------------------------------
    phase = r * inv_range                                       # r / (range/pi)
    re_rel = jnp.cos(phase)
    im_rel = jnp.sin(phase)
    re_rot = re_h * re_rel - im_h * im_rel                      # (B, dh)
    im_rot = re_h * im_rel + im_h * re_rel

    # ---- single slab for positive + negative targets ------------------------
    # rows 0..B-1 = positives (tails); rows B.. = negatives (NEG-major order,
    # matching the replicated rotated head below).  All offsets are multiples
    # of 8 -> sublane-tile aligned, no relayouts.
    tgt_re = jnp.concatenate([re_t, re_n], axis=0)              # (B*(1+NEG), dh)
    tgt_im = jnp.concatenate([im_t, im_n], axis=0)
    rot_re = jnp.concatenate([re_rot] * (1 + neg), axis=0)
    rot_im = jnp.concatenate([im_rot] * (1 + neg), axis=0)

    d_re = rot_re - tgt_re
    d_im = rot_im - tgt_im
    dist = jnp.sqrt(d_re * d_re + d_im * d_im)                  # (B*(1+NEG), dh)
    score = GAMMA - jnp.sum(dist, axis=-1, keepdims=True)       # (B*(1+NEG), 1)
    ls = _log_sigmoid(score)

    # mean_b mean_j == mean over all (b, j) since every b has exactly `neg` negatives
    pos_loss = -jnp.sum(ls[:batch]) / batch
    neg_loss = -jnp.sum(ls[batch:]) / (batch * neg)
    out_ref[0, 0] = 0.5 * (pos_loss + neg_loss)


@jax.jit
def kg_function_forward(entity_emb, rel_emb, sample, neg_idx):
    """Forward pass of KGFunction (rotate branch). Returns scalar loss."""
    num_entity, _ = entity_emb.shape
    num_relation, dh = rel_emb.shape
    batch = sample.shape[0]
    neg = neg_idx.shape[1]

    # Pre-split the entity table into real/imag halves once (free layout
    # plumbing; avoids in-kernel lane-offset slices).
    ent_tab = jnp.stack([entity_emb[:, :dh], entity_emb[:, dh:]], axis=0)

    # One fused int32 index slab: [head | tail | neg (NEG-major) | rel].
    neg_flat = jnp.transpose(neg_idx).reshape(-1)               # (NEG*B,) NEG-major
    idx = jnp.concatenate(
        [sample[:, 0], sample[:, 2], neg_flat, sample[:, 1]]).astype(jnp.int32)
    idx = idx[:, None]                                          # (3B + B*NEG, 1)

    kernel = functools.partial(
        _kg_rotate_kernel, batch=batch, neg=neg,
        num_entity=num_entity, num_relation=num_relation)

    # Whole problem fits one VMEM block at these sizes -> gridless call.
    # TODO(synk): for large entity tables / batches, tile the batch with a
    # ("parallel",) grid (2 TCs on v7x) and gather rows via pl.Element /
    # manual DMA instead of whole-table VMEM residency.
    out = pl.pallas_call(
        kernel,
        out_shape=jax.ShapeDtypeStruct((1, 1), jnp.float32),
        in_specs=[pl.BlockSpec(memory_space=pltpu.MemorySpace.VMEM)] * 3,
        out_specs=pl.BlockSpec(memory_space=pltpu.MemorySpace.SMEM),
    )(idx, ent_tab, rel_emb)
    return out[0, 0]


def _reference_loss(entity_emb, rel_emb, sample, neg_idx):
    """Pure-JAX mirror of the PyTorch rotate-branch forward (for checking)."""
    dh = rel_emb.shape[1]
    emb_range = rotate_embedding_range()
    h = entity_emb[sample[:, 0]]
    r = rel_emb[sample[:, 1]]
    t = entity_emb[sample[:, 2]]
    negs = entity_emb[neg_idx]                                  # (B, NEG, DIM)

    re_h, im_h = h[:, :dh], h[:, dh:]
    phase = r / (emb_range / PI)
    re_rel, im_rel = jnp.cos(phase), jnp.sin(phase)
    re_rot = re_h * re_rel - im_h * im_rel
    im_rot = re_h * im_rel + im_h * re_rel

    def rot_score(re_t, im_t, re_r, im_r):
        d = jnp.sqrt((re_r - re_t) ** 2 + (im_r - im_t) ** 2)
        return GAMMA - d.sum(-1)

    pos = jax.nn.log_sigmoid(rot_score(t[:, :dh], t[:, dh:], re_rot, im_rot))
    neg = jax.nn.log_sigmoid(
        rot_score(negs[:, :, :dh], negs[:, :, dh:],
                  re_rot[:, None, :], im_rot[:, None, :]))
    return 0.5 * (-pos.mean() + -(neg.mean(axis=1)).mean())


if __name__ == "__main__":
    num_entity = 50
    num_relation = 10
    batch = 8

    key = jax.random.PRNGKey(0)
    k_ent, k_rel, k_smp, k_neg = jax.random.split(key, 4)

    emd_range = rotate_embedding_range()
    # nn.init.uniform_(entity_embedding_layer, -emd_range, emd_range)
    entity_emb = jax.random.uniform(
        k_ent, (num_entity, DIM), minval=-emd_range, maxval=emd_range,
        dtype=jnp.float32)
    # nn.init.uniform_(rel_embedding_layer, -emd_range, emd_range), dim = DIM//2
    rel_emb = jax.random.uniform(
        k_rel, (num_relation, DIM // 2), minval=-emd_range, maxval=emd_range,
        dtype=jnp.float32)

    # sample[:, 0] = head idx, sample[:, 1] = relation idx, sample[:, 2] = tail idx
    heads = jax.random.randint(k_smp, (batch,), 0, num_entity)
    rels = jax.random.randint(jax.random.fold_in(k_smp, 1), (batch,), 0, num_relation)
    tails = jax.random.randint(jax.random.fold_in(k_smp, 2), (batch,), 0, num_entity)
    sample = jnp.stack([heads, rels, tails], axis=1).astype(jnp.int32)

    # TODO(synk): torch.randint negative sampling is stateful RNG; negatives
    # are generated deterministically in the wrapper instead.
    neg_idx = jax.random.randint(
        k_neg, (batch, NEG_PER_POS), 0, num_entity).astype(jnp.int32)

    loss = kg_function_forward(entity_emb, rel_emb, sample, neg_idx)
    jax.block_until_ready(loss)
    assert loss.shape == () and jnp.isfinite(loss)

    ref = _reference_loss(entity_emb, rel_emb, sample, neg_idx)
    assert jnp.allclose(loss, ref, rtol=1e-2, atol=1e-2), (loss, ref)

    print("KERNEL_OK")
</pallas_src>

<mosaic_0001>
module attributes {stable_mosaic.version = 11 : i64} {
  func.func @_kg_rotate_kernel(%arg0: memref<56x1xi32, #tpu.memory_space<vmem>>, %arg1: memref<2x50x16xf32, #tpu.memory_space<vmem>>, %arg2: memref<10x16xf32, #tpu.memory_space<vmem>>, %arg3: memref<1x1xf32, #tpu.memory_space<smem>>) attributes {dimension_semantics = [], scalar_prefetch = 0 : i64, scratch_operands = 0 : i64, tpu.core_type = #tpu.core_type<tc>} {
    %c0 = arith.constant 0 : index
    %c0_0 = arith.constant 0 : index
    %0 = vector.load %arg0[%c0, %c0_0] : memref<56x1xi32, #tpu.memory_space<vmem>>, vector<56x1xi32>
    %1 = vector.extract_strided_slice %0 {offsets = [0, 0], sizes = [48, 1], strides = [1, 1]} : vector<56x1xi32> to vector<48x1xi32>
    %2 = vector.extract_strided_slice %0 {offsets = [48, 0], sizes = [8, 1], strides = [1, 1]} : vector<56x1xi32> to vector<8x1xi32>
    %3 = tpu.iota {dimensions = array<i32: 1>} : vector<48x50xi32>
    %4 = vector.broadcast %1 : vector<48x1xi32> to vector<48x50xi32>
    %5 = arith.cmpi eq, %4, %3 : vector<48x50xi32>
    %6 = arith.extui %5 : vector<48x50xi1> to vector<48x50xi32>
    %7 = arith.sitofp %6 : vector<48x50xi32> to vector<48x50xf32>
    %c0_1 = arith.constant 0 : index
    %c0_2 = arith.constant 0 : index
    %c0_3 = arith.constant 0 : index
    %8 = vector.load %arg1[%c0_1, %c0_2, %c0_3] : memref<2x50x16xf32, #tpu.memory_space<vmem>>, vector<1x50x16xf32>
    %9 = vector.shape_cast %8 : vector<1x50x16xf32> to vector<50x16xf32>
    %cst = arith.constant dense<0.000000e+00> : vector<48x16xf32>
    %10 = tpu.matmul %7, %9, %cst {dimension_numbers = #tpu.dot_dimension_numbers<[1], [0], [0], [1], [0, 0, 1, 1], [], []>} : vector<48x50xf32>, vector<50x16xf32>, vector<48x16xf32> -> vector<48x16xf32>
    %c1 = arith.constant 1 : index
    %c0_4 = arith.constant 0 : index
    %c0_5 = arith.constant 0 : index
    %11 = vector.load %arg1[%c1, %c0_4, %c0_5] : memref<2x50x16xf32, #tpu.memory_space<vmem>>, vector<1x50x16xf32>
    %12 = vector.shape_cast %11 : vector<1x50x16xf32> to vector<50x16xf32>
    %cst_6 = arith.constant dense<0.000000e+00> : vector<48x16xf32>
    %13 = tpu.matmul %7, %12, %cst_6 {dimension_numbers = #tpu.dot_dimension_numbers<[1], [0], [0], [1], [0, 0, 1, 1], [], []>} : vector<48x50xf32>, vector<50x16xf32>, vector<48x16xf32> -> vector<48x16xf32>
    %14 = tpu.iota {dimensions = array<i32: 1>} : vector<8x10xi32>
    %15 = vector.broadcast %2 : vector<8x1xi32> to vector<8x10xi32>
    %16 = arith.cmpi eq, %15, %14 : vector<8x10xi32>
    %17 = arith.extui %16 : vector<8x10xi1> to vector<8x10xi32>
    %18 = arith.sitofp %17 : vector<8x10xi32> to vector<8x10xf32>
    %c0_7 = arith.constant 0 : index
    %c0_8 = arith.constant 0 : index
    %19 = vector.load %arg2[%c0_7, %c0_8] : memref<10x16xf32, #tpu.memory_space<vmem>>, vector<10x16xf32>
    %cst_9 = arith.constant dense<0.000000e+00> : vector<8x16xf32>
    %20 = tpu.matmul %18, %19, %cst_9 {dimension_numbers = #tpu.dot_dimension_numbers<[1], [0], [0], [1], [0, 0, 1, 1], [], []>} : vector<8x10xf32>, vector<10x16xf32>, vector<8x16xf32> -> vector<8x16xf32>
    %21 = vector.extract_strided_slice %10 {offsets = [0, 0], sizes = [8, 16], strides = [1, 1]} : vector<48x16xf32> to vector<8x16xf32>
    %22 = vector.extract_strided_slice %13 {offsets = [0, 0], sizes = [8, 16], strides = [1, 1]} : vector<48x16xf32> to vector<8x16xf32>
    %23 = vector.extract_strided_slice %10 {offsets = [8, 0], sizes = [8, 16], strides = [1, 1]} : vector<48x16xf32> to vector<8x16xf32>
    %24 = vector.extract_strided_slice %13 {offsets = [8, 0], sizes = [8, 16], strides = [1, 1]} : vector<48x16xf32> to vector<8x16xf32>
    %25 = vector.extract_strided_slice %10 {offsets = [16, 0], sizes = [32, 16], strides = [1, 1]} : vector<48x16xf32> to vector<32x16xf32>
    %26 = vector.extract_strided_slice %13 {offsets = [16, 0], sizes = [32, 16], strides = [1, 1]} : vector<48x16xf32> to vector<32x16xf32>
    %cst_10 = arith.constant 7.18078327 : f32
    %27 = vector.broadcast %cst_10 : f32 to vector<8x16xf32>
    %28 = arith.mulf %20, %27 : vector<8x16xf32>
    %29 = math.cos %28 : vector<8x16xf32>
    %30 = math.sin %28 : vector<8x16xf32>
    %31 = arith.mulf %21, %29 : vector<8x16xf32>
    %32 = arith.mulf %22, %30 : vector<8x16xf32>
    %33 = arith.subf %31, %32 : vector<8x16xf32>
    %34 = arith.mulf %21, %30 : vector<8x16xf32>
    %35 = arith.mulf %22, %29 : vector<8x16xf32>
    %36 = arith.addf %34, %35 : vector<8x16xf32>
    %37 = tpu.concatenate %23, %25 in 0 : vector<8x16xf32>, vector<32x16xf32> -> vector<40x16xf32>
    %38 = tpu.concatenate %24, %26 in 0 : vector<8x16xf32>, vector<32x16xf32> -> vector<40x16xf32>
    %39 = tpu.concatenate %33, %33, %33, %33, %33 in 0 : vector<8x16xf32>, vector<8x16xf32>, vector<8x16xf32>, vector<8x16xf32>, vector<8x16xf32> -> vector<40x16xf32>
    %40 = tpu.concatenate %36, %36, %36, %36, %36 in 0 : vector<8x16xf32>, vector<8x16xf32>, vector<8x16xf32>, vector<8x16xf32>, vector<8x16xf32> -> vector<40x16xf32>
    %41 = arith.subf %39, %37 : vector<40x16xf32>
    %42 = arith.subf %40, %38 : vector<40x16xf32>
    %43 = arith.mulf %41, %41 : vector<40x16xf32>
    %44 = arith.mulf %42, %42 : vector<40x16xf32>
    %45 = arith.addf %43, %44 : vector<40x16xf32>
    %46 = math.sqrt %45 : vector<40x16xf32>
    %cst_11 = arith.constant dense<0.000000e+00> : vector<40xf32>
    %47 = vector.multi_reduction <add>, %46, %cst_11 [1] : vector<40x16xf32> to vector<40xf32>
    %48 = vector.shape_cast %47 : vector<40xf32> to vector<40x1xf32>
    %cst_12 = arith.constant 1.200000e+01 : f32
    %49 = vector.broadcast %cst_12 : f32 to vector<40x1xf32>
    %50 = arith.subf %49, %48 : vector<40x1xf32>
    %cst_13 = arith.constant 0.000000e+00 : f32
    %51 = vector.broadcast %cst_13 : f32 to vector<40x1xf32>
    %52 = arith.minimumf %50, %51 : vector<40x1xf32>
    %53 = math.absf %50 : vector<40x1xf32>
    %cst_14 = arith.constant 0.000000e+00 : f32
    %54 = vector.broadcast %cst_14 : f32 to vector<40x1xf32>
    %55 = arith.subf %54, %53 : vector<40x1xf32>
    %56 = math.exp %55 : vector<40x1xf32>
    %57 = math.log1p %56 : vector<40x1xf32>
    %58 = arith.subf %52, %57 : vector<40x1xf32>
    %59 = vector.extract_strided_slice %58 {offsets = [0, 0], sizes = [8, 1], strides = [1, 1]} : vector<40x1xf32> to vector<8x1xf32>
    %60 = vector.shape_cast %59 : vector<8x1xf32> to vector<1x8x1xf32>
    %cst_15 = arith.constant dense<0.000000e+00> : vector<1xf32>
    %61 = vector.multi_reduction <add>, %60, %cst_15 [1, 2] : vector<1x8x1xf32> to vector<1xf32>
    %62 = vector.shape_cast %61 : vector<1xf32> to vector<1x1x1xf32>
    %63 = vector.extract %62[0, 0, 0] : f32 from vector<1x1x1xf32>
    %cst_16 = arith.constant 0.000000e+00 : f32
    %64 = arith.subf %cst_16, %63 : f32
    %cst_17 = arith.constant 8.000000e+00 : f32
    %65 = arith.divf %64, %cst_17 : f32
    %66 = vector.extract_strided_slice %58 {offsets = [8, 0], sizes = [32, 1], strides = [1, 1]} : vector<40x1xf32> to vector<32x1xf32>
    %67 = vector.shape_cast %66 : vector<32x1xf32> to vector<1x32x1xf32>
    %cst_18 = arith.constant dense<0.000000e+00> : vector<1xf32>
    %68 = vector.multi_reduction <add>, %67, %cst_18 [1, 2] : vector<1x32x1xf32> to vector<1xf32>
    %69 = vector.shape_cast %68 : vector<1xf32> to vector<1x1x1xf32>
    %70 = vector.extract %69[0, 0, 0] : f32 from vector<1x1x1xf32>
    %cst_19 = arith.constant 0.000000e+00 : f32
    %71 = arith.subf %cst_19, %70 : f32
    %cst_20 = arith.constant 3.200000e+01 : f32
    %72 = arith.divf %71, %cst_20 : f32
    %73 = arith.addf %65, %72 : f32
    %cst_21 = arith.constant 5.000000e-01 : f32
    %74 = arith.mulf %cst_21, %73 : f32
    %c0_22 = arith.constant 0 : index
    %c0_23 = arith.constant 0 : index
    %75 = memref.load %arg3[%c0_22, %c0_23] : memref<1x1xf32, #tpu.memory_space<smem>>
    memref.store %74, %arg3[%c0_22, %c0_23] : memref<1x1xf32, #tpu.memory_space<smem>>
    return
  }
}

</mosaic_0001>

<llo_original>
// kernel: kg_function_forward.1
$region0: #{kg_function_forward.1}
  #allocation0 [shape = 'u32[]', space=smem, size = 0x4, offset = 0x4, fixed_abs, tag = 'smem constant byte address 0x4 - core index']
  #allocation1 [shape = 'u32[144,128]{1,0:T(1,128)}', space=vmem, size = 0x12000, scoped, tag = 'internal scratch']
  %s0 = inlined_call_operand.vmem [shape: s32[56,1], index: 0, kind: input, shape index: {}]
  %s1 = inlined_call_operand.vmem [shape: f32[2,50,16], index: 1, kind: input, shape index: {}]
  %s2 = inlined_call_operand.vmem [shape: f32[10,16], index: 2, kind: input, shape index: {}]
  %s3 = inlined_call_operand.hbm [shape: f32[1,1], index: 3, kind: output, shape index: {}]
  %s4 = sld [smem:[#allocation0]]
  $region22: #{kg_function_forward.1} parent=0
    _
  %s6 = ssub.s32 1, %s4
  %s7 = scalar_select 0, %s6, %s4
  $region1: #{kg_function_forward.1} parent=0
    #allocation2 [shape = 'u8[512]{0}', space=smem, size = 0x200, scoped, tag = 'output window, operand 0, single buffered']
    #allocation3 [shape = 's32[1]{0}', space=sflag, size = 0x4, scoped, tag = 'scoped memory for kg_function_forward.1']
    %8 = vsyncpa [#allocation3], 0
    // Predicated region
    $region2: #{kg_function_forward.1} parent=1 // pred_check
      _
    $region3: #{kg_function_forward.1} parent=1 // pred_check_branch
      %10 = sbr.rel (0) target = $region5
    $region4: #{kg_function_forward.1} parent=1 // pred_region
      _
    $region5: #{kg_function_forward.1} parent=1 // pred_fallthru
      _
    // Predicated region
    $region6: #{kg_function_forward.1} parent=1 // pred_check
      _
    $region7: #{kg_function_forward.1} parent=1 // pred_check_branch
      %12 = sbr.rel (0) target = $region9
    $region8: #{kg_function_forward.1} parent=1 // pred_region
      _
    $region9: #{kg_function_forward.1} parent=1 // pred_fallthru
      _
    // Predicated region
    $region10: #{kg_function_forward.1} parent=1 // pred_check
      _
    $region11: #{kg_function_forward.1} parent=1 // pred_check_branch
      %14 = sbr.rel (0) target = $region13
    $region12: #{kg_function_forward.1} parent=1 // pred_region
      _
    $region13: #{kg_function_forward.1} parent=1 // pred_fallthru
      _
    %v15 = vld [vmem:[%s0] sm:$0xff]
    %v16 = vld [vmem:[%s0 + $0x8] sm:$0xff]
    %v17 = vld [vmem:[%s0 + $0x10] sm:$0xff]
    %v18 = vld [vmem:[%s0 + $0x18] sm:$0xff]
    %v19 = vld [vmem:[%s0 + $0x20] sm:$0xff]
    %v20 = vld [vmem:[%s0 + $0x28] sm:$0xff]
    %v21 = vld [vmem:[%s0 + $0x30] sm:$0xff]
    %v22 = vlaneseq
    %v23 = vand.u32 %v22, 127
    %24 = vset.pattern.permute.xlu0 0
    %25 = vperm.xlu0 %24, %v15
    %v26 = vpop.permute.xlu0 %25
    %27 = vset.pattern.permute.xlu0 0
    %28 = vperm.xlu0 %27, %v16
    %v29 = vpop.permute.xlu0 %28
    %30 = vset.pattern.permute.xlu0 0
    %31 = vperm.xlu0 %30, %v17
    %v32 = vpop.permute.xlu0 %31
    %33 = vset.pattern.permute.xlu0 0
    %34 = vperm.xlu0 %33, %v18
    %v35 = vpop.permute.xlu0 %34
    %36 = vset.pattern.permute.xlu0 0
    %37 = vperm.xlu0 %36, %v19
    %v38 = vpop.permute.xlu0 %37
    %39 = vset.pattern.permute.xlu0 0
    %40 = vperm.xlu0 %39, %v20
    %v41 = vpop.permute.xlu0 %40
    %vm42 = vcmp.eq.s32.totalorder %v26, %v23
    %vm43 = vcmp.eq.s32.totalorder %v29, %v23
    %vm44 = vcmp.eq.s32.totalorder %v32, %v23
    %vm45 = vcmp.eq.s32.totalorder %v35, %v23
    %vm46 = vcmp.eq.s32.totalorder %v38, %v23
    %vm47 = vcmp.eq.s32.totalorder %v41, %v23
    %v48 = vsel %vm42, 1, 0
    %v49 = vsel %vm43, 1, 0
    %v50 = vsel %vm44, 1, 0
    %v51 = vsel %vm45, 1, 0
    %v52 = vsel %vm46, 1, 0
    %v53 = vsel %vm47, 1, 0
    %v54 = vcvt.s32.f32 %v48
    %v55 = vcvt.s32.f32 %v49
    %v56 = vcvt.s32.f32 %v50
    %v57 = vcvt.s32.f32 %v51
    %v58 = vcvt.s32.f32 %v52
    %v59 = vcvt.s32.f32 %v53
    %v60 = vld [vmem:[%s1] sm:$0xff]
    %v61 = vld [vmem:[%s1 + $0x8] sm:$0xff]
    %v62 = vld [vmem:[%s1 + $0x10] sm:$0xff]
    %v63 = vld [vmem:[%s1 + $0x18] sm:$0xff]
    %v64 = vld [vmem:[%s1 + $0x20] sm:$0xff]
    %v65 = vld [vmem:[%s1 + $0x28] sm:$0xff]
    %v66 = vld [vmem:[%s1 + $0x30] sm:$0x3]
    %vm67 = vcmask 408576
    %v69 = vsel %vm67, %v54, 0
    %v72 = vsel %vm67, %v55, 0
    %v75 = vsel %vm67, %v56, 0
    %v78 = vsel %vm67, %v57, 0
    %v81 = vsel %vm67, %v58, 0
    %v84 = vsel %vm67, %v59, 0
    %vm86 = vcmask 1041408
    %v88 = vsel %vm86, %v66, 0
    %90 = vmatprep.subr.mxu0 0.0
    %91 = vmatpush1.msra.mxu0 %v60
    %92 = vmatprep.subr.mxu0 0.0
    %93 = vmatpush1.msra.mxu0 %v61
    %94 = vmatprep.subr.mxu0 0.0
    %95 = vmatpush1.msra.mxu0 %v62
    %96 = vmatprep.subr.mxu0 0.0
    %97 = vmatpush1.msra.mxu0 %v63
    %98 = vmatprep.subr.mxu0 0.0
    %99 = vmatpush1.msra.mxu0 %v64
    %100 = vmatprep.subr.mxu0 0.0
    %101 = vmatpush1.msra.mxu0 %v65
    %102 = vmatprep.subr.mxu0 0.0
    %103 = vmatpush1.msra.mxu0 %v88
    %104 = vmatprep.subr.mxu0 0.0
    %105 = vmatpush1.msra.mxu0 0.0
    %106 = vmatprep.subr.mxu0 0.0
    %107 = vmatpush1.msra.mxu0 0.0
    %108 = vmatprep.subr.mxu0 0.0
    %109 = vmatpush1.msra.mxu0 0.0
    %110 = vmatprep.subr.mxu0 0.0
    %111 = vmatpush1.msra.mxu0 0.0
    %112 = vmatprep.subr.mxu0 0.0
    %113 = vmatpush1.msra.mxu0 0.0
    %114 = vmatprep.subr.mxu0 0.0
    %115 = vmatpush1.msra.mxu0 0.0
    %116 = vmatprep.subr.mxu0 0.0
    %117 = vmatpush1.msra.mxu0 0.0
    %118 = vmatprep.subr.mxu0 0.0
    %119 = vmatpush1.msra.mxu0 0.0
    %120 = vmatprep.subr.mxu0 0.0
    %121 = vmatpush1.msra.mxu0 0.0
    %122 = vmatprep.subr.mxu0 0.0
    %123 = vmatpush1.msra.mxu0 0.0
    %124 = vmatprep.subr.mxu0 0.0
    %125 = vmatpush1.msra.mxu0 0.0
    %126 = vmatprep.subr.mxu0 0.0
    %127 = vmatpush1.msra.mxu0 0.0
    %128 = vmatprep.subr.mxu0 0.0
    %129 = vmatpush1.msra.mxu0 0.0
    %130 = vmatprep.subr.mxu0 0.0
    %131 = vmatpush1.msra.mxu0 0.0
    %132 = vmatprep.subr.mxu0 0.0
    %133 = vmatpush1.msra.mxu0 0.0
    %134 = vmatprep.subr.mxu0 0.0
    %135 = vmatpush1.msra.mxu0 0.0
    %136 = vmatprep.subr.mxu0 0.0
    %137 = vmatpush1.msra.mxu0 0.0
    %138 = vmatprep.subr.mxu0 0.0
    %139 = vmatpush1.msra.mxu0 0.0
    %140 = vmatprep.subr.mxu0 0.0
    %141 = vmatpush1.msra.mxu0 0.0
    %142 = vmatprep.subr.mxu0 0.0
    %143 = vmatpush1.msra.mxu0 0.0
    %144 = vmatprep.subr.mxu0 0.0
    %145 = vmatpush1.msra.mxu0 0.0
    %146 = vmatprep.subr.mxu0 0.0
    %147 = vmatpush1.msra.mxu0 0.0
    %148 = vmatprep.subr.mxu0 0.0
    %149 = vmatpush1.msra.mxu0 0.0
    %150 = vmatprep.subr.mxu0 0.0
    %151 = vmatpush1.msra.mxu0 0.0
    %152 = vmatprep.subr.mxu0 0.0
    %153 = vmatpush1.msra.mxu0 0.0
    %154 = vmatprep.mubr.f32.mxu0 0.0
    %155 = vmatmul.mubr.f32.gmra.mrb[0].mxu0 %v69
    %v156 = vpop.f32.mrb[0].mxu0
    %v157 = vadd.f32 0.0, %v156
    %v158 = vpop.f32.mrb[0].mxu0
    %159 = vmatprep.mubr.f32.mxu0 0.0
    %160 = vmatmul.mubr.f32.gmra.mrb[0].mxu0 %v72
    %v161 = vpop.f32.mrb[0].mxu0
    %v162 = vadd.f32 0.0, %v161
    %v163 = vpop.f32.mrb[0].mxu0
    %164 = vmatprep.mubr.f32.mxu0 0.0
    %165 = vmatmul.mubr.f32.gmra.mrb[0].mxu0 %v75
    %v166 = vpop.f32.mrb[0].mxu0
    %v167 = vadd.f32 0.0, %v166
    %v168 = vpop.f32.mrb[0].mxu0
    %169 = vmatprep.mubr.f32.mxu0 0.0
    %170 = vmatmul.mubr.f32.gmra.mrb[0].mxu0 %v78
    %v171 = vpop.f32.mrb[0].mxu0
    %v172 = vadd.f32 0.0, %v171
    %v173 = vpop.f32.mrb[0].mxu0
    %174 = vmatprep.mubr.f32.mxu0 0.0
    %175 = vmatmul.mubr.f32.gmra.mrb[0].mxu0 %v81
    %v176 = vpop.f32.mrb[0].mxu0
    %v177 = vadd.f32 0.0, %v176
    %v178 = vpop.f32.mrb[0].mxu0
    %179 = vmatprep.mubr.f32.mxu0 0.0
    %180 = vmatmul.mubr.f32.gmra.mrb[0].mxu0 %v84
    %v181 = vpop.f32.mrb[0].mxu0
    %v182 = vadd.f32 0.0, %v181
    %v183 = vpop.f32.mrb[0].mxu0
    %184 = vdwg.mxu0
    %s185 = scalar_lea.vmem %s1, 56
    %v186 = vld [vmem:[%s185] sm:$0xff]
    %v187 = vld [vmem:[%s185 + $0x8] sm:$0xff]
    %v188 = vld [vmem:[%s185 + $0x10] sm:$0xff]
    %v189 = vld [vmem:[%s185 + $0x18] sm:$0xff]
    %v190 = vld [vmem:[%s185 + $0x20] sm:$0xff]
    %v191 = vld [vmem:[%s185 + $0x28] sm:$0xff]
    %v192 = vld [vmem:[%s185 + $0x30] sm:$0x3]
    %v194 = vsel %vm86, %v192, 0
    %196 = vmatprep.subr.mxu0 0.0
    %197 = vmatpush1.msra.mxu0 %v186
    %198 = vmatprep.subr.mxu0 0.0
    %199 = vmatpush1.msra.mxu0 %v187
    %200 = vmatprep.subr.mxu0 0.0
    %201 = vmatpush1.msra.mxu0 %v188
    %202 = vmatprep.subr.mxu0 0.0
    %203 = vmatpush1.msra.mxu0 %v189
    %204 = vmatprep.subr.mxu0 0.0
    %205 = vmatpush1.msra.mxu0 %v190
    %206 = vmatprep.subr.mxu0 0.0
    %207 = vmatpush1.msra.mxu0 %v191
    %208 = vmatprep.subr.mxu0 0.0
    %209 = vmatpush1.msra.mxu0 %v194
    %210 = vmatprep.subr.mxu0 0.0
    %211 = vmatpush1.msra.mxu0 0.0
    %212 = vmatprep.subr.mxu0 0.0
    %213 = vmatpush1.msra.mxu0 0.0
    %214 = vmatprep.subr.mxu0 0.0
    %215 = vmatpush1.msra.mxu0 0.0
    %216 = vmatprep.subr.mxu0 0.0
    %217 = vmatpush1.msra.mxu0 0.0
    %218 = vmatprep.subr.mxu0 0.0
    %219 = vmatpush1.msra.mxu0 0.0
    %220 = vmatprep.subr.mxu0 0.0
    %221 = vmatpush1.msra.mxu0 0.0
    %222 = vmatprep.subr.mxu0 0.0
    %223 = vmatpush1.msra.mxu0 0.0
    %224 = vmatprep.subr.mxu0 0.0
    %225 = vmatpush1.msra.mxu0 0.0
    %226 = vmatprep.subr.mxu0 0.0
    %227 = vmatpush1.msra.mxu0 0.0
    %228 = vmatprep.subr.mxu0 0.0
    %229 = vmatpush1.msra.mxu0 0.0
    %230 = vmatprep.subr.mxu0 0.0
    %231 = vmatpush1.msra.mxu0 0.0
    %232 = vmatprep.subr.mxu0 0.0
    %233 = vmatpush1.msra.mxu0 0.0
    %234 = vmatprep.subr.mxu0 0.0
    %235 = vmatpush1.msra.mxu0 0.0
    %236 = vmatprep.subr.mxu0 0.0
    %237 = vmatpush1.msra.mxu0 0.0
    %238 = vmatprep.subr.mxu0 0.0
    %239 = vmatpush1.msra.mxu0 0.0
    %240 = vmatprep.subr.mxu0 0.0
    %241 = vmatpush1.msra.mxu0 0.0
    %242 = vmatprep.subr.mxu0 0.0
    %243 = vmatpush1.msra.mxu0 0.0
    %244 = vmatprep.subr.mxu0 0.0
    %245 = vmatpush1.msra.mxu0 0.0
    %246 = vmatprep.subr.mxu0 0.0
    %247 = vmatpush1.msra.mxu0 0.0
    %248 = vmatprep.subr.mxu0 0.0
    %249 = vmatpush1.msra.mxu0 0.0
    %250 = vmatprep.subr.mxu0 0.0
    %251 = vmatpush1.msra.mxu0 0.0
    %252 = vmatprep.subr.mxu0 0.0
    %253 = vmatpush1.msra.mxu0 0.0
    %254 = vmatprep.subr.mxu0 0.0
    %255 = vmatpush1.msra.mxu0 0.0
    %256 = vmatprep.subr.mxu0 0.0
    %257 = vmatpush1.msra.mxu0 0.0
    %258 = vmatprep.subr.mxu0 0.0
    %259 = vmatpush1.msra.mxu0 0.0
    %260 = vmatprep.mubr.f32.mxu0 0.0
    %261 = vmatmul.mubr.f32.gmra.mrb[0].mxu0 %v69
    %v262 = vpop.f32.mrb[0].mxu0
    %v263 = vadd.f32 0.0, %v262
    %v264 = vpop.f32.mrb[0].mxu0
    %265 = vmatprep.mubr.f32.mxu0 0.0
    %266 = vmatmul.mubr.f32.gmra.mrb[0].mxu0 %v72
    %v267 = vpop.f32.mrb[0].mxu0
    %v268 = vadd.f32 0.0, %v267
    %v269 = vpop.f32.mrb[0].mxu0
    %270 = vmatprep.mubr.f32.mxu0 0.0
    %271 = vmatmul.mubr.f32.gmra.mrb[0].mxu0 %v75
    %v272 = vpop.f32.mrb[0].mxu0
    %v273 = vadd.f32 0.0, %v272
    %v274 = vpop.f32.mrb[0].mxu0
    %275 = vmatprep.mubr.f32.mxu0 0.0
    %276 = vmatmul.mubr.f32.gmra.mrb[0].mxu0 %v78
    %v277 = vpop.f32.mrb[0].mxu0
    %v278 = vadd.f32 0.0, %v277
    %v279 = vpop.f32.mrb[0].mxu0
    %280 = vmatprep.mubr.f32.mxu0 0.0
    %281 = vmatmul.mubr.f32.gmra.mrb[0].mxu0 %v81
    %v282 = vpop.f32.mrb[0].mxu0
    %v283 = vadd.f32 0.0, %v282
    %v284 = vpop.f32.mrb[0].mxu0
    %285 = vmatprep.mubr.f32.mxu0 0.0
    %286 = vmatmul.mubr.f32.gmra.mrb[0].mxu0 %v84
    %v287 = vpop.f32.mrb[0].mxu0
    %v288 = vadd.f32 0.0, %v287
    %v289 = vpop.f32.mrb[0].mxu0
    %290 = vdwg.mxu0
    %291 = vset.pattern.permute.xlu0 0
    %292 = vperm.xlu0 %291, %v21
    %v293 = vpop.permute.xlu0 %292
    %vm294 = vcmp.eq.s32.totalorder %v293, %v23
    %v295 = vsel %vm294, 1, 0
    %v296 = vcvt.s32.f32 %v295
    %v297 = vld [vmem:[%s2] sm:$0xff]
    %v298 = vld [vmem:[%s2 + $0x8] sm:$0x3]
    %vm299 = vcmask 80896
    %v301 = vsel %vm299, %v296, 0
    %v304 = vsel %vm86, %v298, 0
    %306 = vmatprep.subr.mxu0 0.0
    %307 = vmatpush1.msra.mxu0 %v297
    %308 = vmatprep.subr.mxu0 0.0
    %309 = vmatpush1.msra.mxu0 %v304
    %310 = vmatprep.subr.mxu0 0.0
    %311 = vmatpush1.msra.mxu0 0.0
    %312 = vmatprep.subr.mxu0 0.0
    %313 = vmatpush1.msra.mxu0 0.0
    %314 = vmatprep.subr.mxu0 0.0
    %315 = vmatpush1.msra.mxu0 0.0
    %316 = vmatprep.subr.mxu0 0.0
    %317 = vmatpush1.msra.mxu0 0.0
    %318 = vmatprep.subr.mxu0 0.0
    %319 = vmatpush1.msra.mxu0 0.0
    %320 = vmatprep.subr.mxu0 0.0
    %321 = vmatpush1.msra.mxu0 0.0
    %322 = vmatprep.subr.mxu0 0.0
    %323 = vmatpush1.msra.mxu0 0.0
    %324 = vmatprep.subr.mxu0 0.0
    %325 = vmatpush1.msra.mxu0 0.0
    %326 = vmatprep.subr.mxu0 0.0
    %327 = vmatpush1.msra.mxu0 0.0
    %328 = vmatprep.subr.mxu0 0.0
    %329 = vmatpush1.msra.mxu0 0.0
    %330 = vmatprep.subr.mxu0 0.0
    %331 = vmatpush1.msra.mxu0 0.0
    %332 = vmatprep.subr.mxu0 0.0
    %333 = vmatpush1.msra.mxu0 0.0
    %334 = vmatprep.subr.mxu0 0.0
    %335 = vmatpush1.msra.mxu0 0.0
    %336 = vmatprep.subr.mxu0 0.0
    %337 = vmatpush1.msra.mxu0 0.0
    %338 = vmatprep.subr.mxu0 0.0
    %339 = vmatpush1.msra.mxu0 0.0
    %340 = vmatprep.subr.mxu0 0.0
    %341 = vmatpush1.msra.mxu0 0.0
    %342 = vmatprep.subr.mxu0 0.0
    %343 = vmatpush1.msra.mxu0 0.0
    %344 = vmatprep.subr.mxu0 0.0
    %345 = vmatpush1.msra.mxu0 0.0
    %346 = vmatprep.subr.mxu0 0.0
    %347 = vmatpush1.msra.mxu0 0.0
    %348 = vmatprep.subr.mxu0 0.0
    %349 = vmatpush1.msra.mxu0 0.0
    %350 = vmatprep.subr.mxu0 0.0
    %351 = vmatpush1.msra.mxu0 0.0
    %352 = vmatprep.subr.mxu0 0.0
    %353 = vmatpush1.msra.mxu0 0.0
    %354 = vmatprep.subr.mxu0 0.0
    %355 = vmatpush1.msra.mxu0 0.0
    %356 = vmatprep.subr.mxu0 0.0
    %357 = vmatpush1.msra.mxu0 0.0
    %358 = vmatprep.subr.mxu0 0.0
    %359 = vmatpush1.msra.mxu0 0.0
    %360 = vmatprep.subr.mxu0 0.0
    %361 = vmatpush1.msra.mxu0 0.0
    %362 = vmatprep.subr.mxu0 0.0
    %363 = vmatpush1.msra.mxu0 0.0
    %364 = vmatprep.subr.mxu0 0.0
    %365 = vmatpush1.msra.mxu0 0.0
    %366 = vmatprep.subr.mxu0 0.0
    %367 = vmatpush1.msra.mxu0 0.0
    %368 = vmatprep.subr.mxu0 0.0
    %369 = vmatpush1.msra.mxu0 0.0
    %370 = vmatprep.mubr.f32.mxu0 0.0
    %371 = vmatmul.mubr.f32.gmra.mrb[0].mxu0 %v301
    %v372 = vpop.f32.mrb[0].mxu0
    %v373 = vadd.f32 0.0, %v372
    %v374 = vpop.f32.mrb[0].mxu0
    %375 = vdwg.mxu0
    %v376 = vmul.f32 %v373, 7.1807833
    %v377 = vand.u32 2147483647, %v376
    %vm378 = vcmp.le.f32.partialorder %v377, 0.7853982
    %vm379 = vcmp.lt.s32.totalorder %v376, 0
    %v380 = vand.u32 %v376, 2139095040
    %v381 = vshrl.u32 %v380, 23
    %v382 = vsub.s32 %v381, 127
    %v383 = vand.u32 2147483647, %v376
    %v384 = vand.u32 %v383, 8388607
    %v385 = vor.u32 %v384, 8388608
    %v386 = vsub.s32 0, %v385
    %v387 = vadd.s32 %v382, 1
    %vm388 = vcmp.gt.s32.totalorder %v387, 0
    %v389 = vsel %vm388, %v387, 0
    %v390 = vshrl.u32 %v389, 5
    %v391 = vand.u32 %v389, 31
    %v392 = vsub.s32 32, %v391
    %v393 = vshrl.u32 683565275, %v392
    %v394 = vshll.u32 683565275, %v391
    %v395 = vshrl.u32 2475754826, %v392
    %v396 = vor.u32 %v394, %v395
    %v397 = vshll.u32 2475754826, %v391
    %v398 = vshrl.u32 2131351028, %v392
    %v399 = vor.u32 %v397, %v398
    %v400 = vshll.u32 2131351028, %v391
    %v401 = vshrl.u32 2102212464, %v392
    %v402 = vor.u32 %v400, %v401
    %v403 = vshll.u32 2102212464, %v391
    %v404 = vshrl.u32 920167782, %v392
    %v405 = vor.u32 %v403, %v404
    %v406 = vshll.u32 920167782, %v391
    %v407 = vshrl.u32 1326507024, %v392
    %v408 = vor.u32 %v406, %v407
    %vm409 = vcmp.lt.s32.totalorder %v390, 1
    %vm410 = vcmp.lt.s32.totalorder %v390, 2
    %vm411 = vcmp.lt.s32.totalorder %v390, 3
    %vm412 = vcmp.lt.s32.totalorder %v390, 4
    %v413 = vsel %vm409, %v393, %v396
    %v414 = vsel %vm412, %v402, 2102212464
    %v415 = vsel %vm411, %v399, %v414
    %v416 = vsel %vm410, %v413, %v415
    %v417 = vsel %vm409, %v396, %v399
    %v418 = vsel %vm412, %v405, 920167782
    %v419 = vsel %vm411, %v402, %v418
    %v420 = vsel %vm410, %v417, %v419
    %v421 = vsel %vm409, %v399, %v402
    %v422 = vsel %vm412, %v408, 1326507024
    %v423 = vsel %vm411, %v405, %v422
    %v424 = vsel %vm410, %v421, %v423
    %v425 = vshll.u32 %v385, 8
    %v426 = vmul.u32.u64.compose %v425, %v424
    %v427 = vextract.low.u32 %v426
    %v428 = vextract.high.u32 %v426
    %v429 = vmul.u32.u64.compose %v425, %v420
    %v430 = vextract.low.u32 %v429
    %v431 = vextract.high.u32 %v429
    %v432 = vmul.u32 %v425, %v416
    %v433 = vadd.s32 %v428, %v430
    %vm434 = vc.u32 %v428, %v430
    %v435 = vadd.s32 %v431, 1
    %v436 = vsel %vm434, %v435, %v431
    %v437 = vadd.s32 %v432, %v436
    %v438 = vadd.s32 %v437, 536870912
    %v439 = vshrl.u32 %v438, 30
    %v440 = vshll.u32 %v439, 30
    %v441 = vsub.s32 %v437, %v440
    %vm442 = vcmp.lt.s32.totalorder %v441, 0
    %v443 = vsub.s32 0, %v441
    %v444 = vsel %vm442, %v443, %v441
    %v445 = vclz %v444
    %v446 = vsub.s32 %v445, 2
    %vm447 = vcmp.gt.s32.totalorder 0, %v446
    %v448 = vsel %vm447, 0, %v446
    %v449 = vsub.s32 32, %v448
    %v450 = vshll.u32 %v441, %v448
    %v451 = vshrl.u32 %v433, %v449
    %v452 = vor.u32 %v450, %v451
    %v453 = vsub.s32 4294967266, %v448
    %v454 = vadd.s32 %v453, 127
    %v455 = vshll.u32 %v454, 23
    %v456 = vor.u32 4788187, %v455
    %v457 = vand.u32 2147483647, %v456
    %v459 = vcvt.s32.f32 %v452
    %v460 = vmul.f32 %v459, %v457
    %v461 = vxor.u32 %v460, 2147483648
    %v462 = vsel %vm379, %v461, %v460
    %v463 = vsub.s32 4, %v439
    %v464 = vsel %vm379, %v463, %v439
    %v465 = vsel %vm378, %v376, %v462
    %v466 = vsel %vm378, 0, %v464
    %v467 = vcosq.f32.pop %v465
    %v468 = vsinq.f32.pop %v465
    %vm469 = vweird.f32 %v376
    %v470 = vand.u32 %v466, 3
    %vm471 = vcmp.lt.s32.totalorder %v470, 2
    %vm472 = vcmp.eq.s32.totalorder %v470, 0
    %v473 = vxor.u32 %v468, 2147483648
    %v474 = vsel %vm472, %v467, %v473
    %vm475 = vcmp.eq.s32.totalorder %v470, 2
    %v476 = vxor.u32 %v467, 2147483648
    %v477 = vsel %vm475, %v476, %v468
    %v478 = vsel %vm471, %v474, %v477
    %v479 = vsel %vm469, nan, %v478
    %v480 = vand.u32 2147483647, %v376
    %vm481 = vcmp.le.f32.partialorder %v480, 0.7853982
    %vm482 = vcmp.lt.s32.totalorder %v376, 0
    %v483 = vand.u32 %v376, 2139095040
    %v484 = vshrl.u32 %v483, 23
    %v485 = vsub.s32 %v484, 127
    %v486 = vand.u32 2147483647, %v376
    %v487 = vand.u32 %v486, 8388607
    %v488 = vor.u32 %v487, 8388608
    %v489 = vsub.s32 0, %v488
    %v490 = vadd.s32 %v485, 1
    %vm491 = vcmp.gt.s32.totalorder %v490, 0
    %v492 = vsel %vm491, %v490, 0
    %v493 = vshrl.u32 %v492, 5
    %v494 = vand.u32 %v492, 31
    %v495 = vsub.s32 32, %v494
    %v496 = vshrl.u32 683565275, %v495
    %v497 = vshll.u32 683565275, %v494
    %v498 = vshrl.u32 2475754826, %v495
    %v499 = vor.u32 %v497, %v498
    %v500 = vshll.u32 2475754826, %v494
    %v501 = vshrl.u32 2131351028, %v495
    %v502 = vor.u32 %v500, %v501
    %v503 = vshll.u32 2131351028, %v494
    %v504 = vshrl.u32 2102212464, %v495
    %v505 = vor.u32 %v503, %v504
    %v506 = vshll.u32 2102212464, %v494
    %v507 = vshrl.u32 920167782, %v495
    %v508 = vor.u32 %v506, %v507
    %v509 = vshll.u32 920167782, %v494
    %v510 = vshrl.u32 1326507024, %v495
    %v511 = vor.u32 %v509, %v510
    %vm512 = vcmp.lt.s32.totalorder %v493, 1
    %vm513 = vcmp.lt.s32.totalorder %v493, 2
    %vm514 = vcmp.lt.s32.totalorder %v493, 3
    %vm515 = vcmp.lt.s32.totalorder %v493, 4
    %v516 = vsel %vm512, %v496, %v499
    %v517 = vsel %vm515, %v505, 2102212464
    %v518 = vsel %vm514, %v502, %v517
    %v519 = vsel %vm513, %v516, %v518
    %v520 = vsel %vm512, %v499, %v502
    %v521 = vsel %vm515, %v508, 920167782
    %v522 = vsel %vm514, %v505, %v521
    %v523 = vsel %vm513, %v520, %v522
    %v524 = vsel %vm512, %v502, %v505
    %v525 = vsel %vm515, %v511, 1326507024
    %v526 = vsel %vm514, %v508, %v525
    %v527 = vsel %vm513, %v524, %v526
    %v528 = vshll.u32 %v488, 8
    %v529 = vmul.u32.u64.compose %v528, %v527
    %v530 = vextract.low.u32 %v529
    %v531 = vextract.high.u32 %v529
    %v532 = vmul.u32.u64.compose %v528, %v523
    %v533 = vextract.low.u32 %v532
    %v534 = vextract.high.u32 %v532
    %v535 = vmul.u32 %v528, %v519
    %v536 = vadd.s32 %v531, %v533
    %vm537 = vc.u32 %v531, %v533
    %v538 = vadd.s32 %v534, 1
    %v539 = vsel %vm537, %v538, %v534
    %v540 = vadd.s32 %v535, %v539
    %v541 = vadd.s32 %v540, 536870912
    %v542 = vshrl.u32 %v541, 30
    %v543 = vshll.u32 %v542, 30
    %v544 = vsub.s32 %v540, %v543
    %vm545 = vcmp.lt.s32.totalorder %v544, 0
    %v546 = vsub.s32 0, %v544
    %v547 = vsel %vm545, %v546, %v544
    %v548 = vclz %v547
    %v549 = vsub.s32 %v548, 2
    %vm550 = vcmp.gt.s32.totalorder 0, %v549
    %v551 = vsel %vm550, 0, %v549
    %v552 = vsub.s32 32, %v551
    %v553 = vshll.u32 %v544, %v551
    %v554 = vshrl.u32 %v536, %v552
    %v555 = vor.u32 %v553, %v554
    %v556 = vsub.s32 4294967266, %v551
    %v557 = vadd.s32 %v556, 127
    %v558 = vshll.u32 %v557, 23
    %v559 = vor.u32 4788187, %v558
    %v560 = vand.u32 2147483647, %v559
    %v562 = vcvt.s32.f32 %v555
    %v563 = vmul.f32 %v562, %v560
    %v564 = vxor.u32 %v563, 2147483648
    %v565 = vsel %vm482, %v564, %v563
    %v566 = vsub.s32 4, %v542
    %v567 = vsel %vm482, %v566, %v542
    %v568 = vsel %vm481, %v376, %v565
    %v569 = vsel %vm481, 0, %v567
    %v570 = vcosq.f32.pop %v568
    %v571 = vsinq.f32.pop %v568
    %vm572 = vweird.f32 %v376
    %v573 = vadd.s32 %v569, 3
    %v574 = vand.u32 %v573, 3
    %vm575 = vcmp.lt.s32.totalorder %v574, 2
    %vm576 = vcmp.eq.s32.totalorder %v574, 0
    %v577 = vxor.u32 %v571, 2147483648
    %v578 = vsel %vm576, %v570, %v577
    %vm579 = vcmp.eq.s32.totalorder %v574, 2
    %v580 = vxor.u32 %v570, 2147483648
    %v581 = vsel %vm579, %v580, %v571
    %v582 = vsel %vm575, %v578, %v581
    %v583 = vsel %vm572, nan, %v582
    %v584 = vmul.f32 %v157, %v479
    %v585 = vmul.f32 %v263, %v583
    %v586 = vsub.f32 %v584, %v585
    %v587 = vmul.f32 %v157, %v583
    %v588 = vmul.f32 %v263, %v479
    %v589 = vadd.f32 %v587, %v588
    %v590 = vsub.f32 %v586, %v162
    %v591 = vsub.f32 %v586, %v167
    %v592 = vsub.f32 %v586, %v172
    %v593 = vsub.f32 %v586, %v177
    %v594 = vsub.f32 %v586, %v182
    %v595 = vsub.f32 %v589, %v268
    %v596 = vsub.f32 %v589, %v273
    %v597 = vsub.f32 %v589, %v278
    %v598 = vsub.f32 %v589, %v283
    %v599 = vsub.f32 %v589, %v288
    %v600 = vmul.f32 %v590, %v590
    %v601 = vmul.f32 %v591, %v591
    %v602 = vmul.f32 %v592, %v592
    %v603 = vmul.f32 %v593, %v593
    %v604 = vmul.f32 %v594, %v594
    %v605 = vmul.f32 %v595, %v595
    %v606 = vmul.f32 %v596, %v596
    %v607 = vmul.f32 %v597, %v597
    %v608 = vmul.f32 %v598, %v598
    %v609 = vmul.f32 %v599, %v599
    %v610 = vadd.f32 %v600, %v605
    %v611 = vadd.f32 %v601, %v606
    %v612 = vadd.f32 %v602, %v607
    %v613 = vadd.f32 %v603, %v608
    %v614 = vadd.f32 %v604, %v609
    %v615 = vrsqrt.pop %v610
    %v616 = vmul.f32 %v610, %v615
    %vm617 = vcmp.eq.f32.partialorder %v610, inf
    %v618 = vsel %vm617, %v610, %v616
    %vm619 = vcmp.eq.f32.partialorder %v610, 0.0
    %v620 = vand.u32 %v610, 2147483648
    %v621 = vsel %vm619, %v620, %v618
    %v622 = vrsqrt.pop %v611
    %v623 = vmul.f32 %v611, %v622
    %vm624 = vcmp.eq.f32.partialorder %v611, inf
    %v625 = vsel %vm624, %v611, %v623
    %vm626 = vcmp.eq.f32.partialorder %v611, 0.0
    %v627 = vand.u32 %v611, 2147483648
    %v628 = vsel %vm626, %v627, %v625
    %v629 = vrsqrt.pop %v612
    %v630 = vmul.f32 %v612, %v629
    %vm631 = vcmp.eq.f32.partialorder %v612, inf
    %v632 = vsel %vm631, %v612, %v630
    %vm633 = vcmp.eq.f32.partialorder %v612, 0.0
    %v634 = vand.u32 %v612, 2147483648
    %v635 = vsel %vm633, %v634, %v632
    %v636 = vrsqrt.pop %v613
    %v637 = vmul.f32 %v613, %v636
    %vm638 = vcmp.eq.f32.partialorder %v613, inf
    %v639 = vsel %vm638, %v613, %v637
    %vm640 = vcmp.eq.f32.partialorder %v613, 0.0
    %v641 = vand.u32 %v613, 2147483648
    %v642 = vsel %vm640, %v641, %v639
    %v643 = vrsqrt.pop %v614
    %v644 = vmul.f32 %v614, %v643
    %vm645 = vcmp.eq.f32.partialorder %v614, inf
    %v646 = vsel %vm645, %v614, %v644
    %vm647 = vcmp.eq.f32.partialorder %v614, 0.0
    %v648 = vand.u32 %v614, 2147483648
    %v649 = vsel %vm647, %v648, %v646
    %vm650 = vcmask 130048
    %v651 = vsel %vm650, %v621, 0.0
    %652 = vadd.xlane.f32.xlu0 %v651
    %v653 = vpop.xlane.xlu0 %652
    %v654 = vsel %vm650, %v628, 0.0
    %655 = vadd.xlane.f32.xlu0 %v654
    %v656 = vpop.xlane.xlu0 %655
    %v657 = vsel %vm650, %v635, 0.0
    %658 = vadd.xlane.f32.xlu0 %v657
    %v659 = vpop.xlane.xlu0 %658
    %v660 = vsel %vm650, %v642, 0.0
    %661 = vadd.xlane.f32.xlu0 %v660
    %v662 = vpop.xlane.xlu0 %661
    %v663 = vsel %vm650, %v649, 0.0
    %664 = vadd.xlane.f32.xlu0 %v663
    %v665 = vpop.xlane.xlu0 %664
    %v666 = vsub.f32 12.0, %v653
    %v667 = vsub.f32 12.0, %v656
    %v668 = vsub.f32 12.0, %v659
    %v669 = vsub.f32 12.0, %v662
    %v670 = vsub.f32 12.0, %v665
    %v671 = vmin.f32 %v666, 0.0
    %v672 = vmin.f32 %v667, 0.0
    %v673 = vmin.f32 %v668, 0.0
    %v674 = vmin.f32 %v669, 0.0
    %v675 = vmin.f32 %v670, 0.0
    %v676 = vand.u32 2147483647, %v666
    %v677 = vand.u32 2147483647, %v667
    %v678 = vand.u32 2147483647, %v668
    %v679 = vand.u32 2147483647, %v669
    %v680 = vand.u32 2147483647, %v670
    %v681 = vsub.f32 0.0, %v676
    %v682 = vsub.f32 0.0, %v677
    %v683 = vsub.f32 0.0, %v678
    %v684 = vsub.f32 0.0, %v679
    %v685 = vsub.f32 0.0, %v680
    %v686 = vmul.f32 %v681, 1.442695
    %v687 = vpow.pop %v686
    %v688 = vmul.f32 %v682, 1.442695
    %v689 = vpow.pop %v688
    %v690 = vmul.f32 %v683, 1.442695
    %v691 = vpow.pop %v690
    %v692 = vmul.f32 %v684, 1.442695
    %v693 = vpow.pop %v692
    %v694 = vmul.f32 %v685, 1.442695
    %v695 = vpow.pop %v694
    %v696 = vadd.f32 %v687, 1.0
    %v697 = vlog2.pop %v696
    %v698 = vmul.f32 %v697, 0.6931472
    %v699 = vmul.f32 -0.5, %v687
    %v700 = vadd.f32 %v699, 1.0
    %v701 = vmul.f32 %v700, %v687
    %v702 = vand.u32 2147483647, %v687
    %vm703 = vcmp.lt.f32.partialorder %v702, 0.0004427343
    %v704 = vsel %vm703, %v701, %v698
    %v705 = vadd.f32 %v689, 1.0
    %v706 = vlog2.pop %v705
    %v707 = vmul.f32 %v706, 0.6931472
    %v708 = vmul.f32 -0.5, %v689
    %v709 = vadd.f32 %v708, 1.0
    %v710 = vmul.f32 %v709, %v689
    %v711 = vand.u32 2147483647, %v689
    %vm712 = vcmp.lt.f32.partialorder %v711, 0.0004427343
    %v713 = vsel %vm712, %v710, %v707
    %v714 = vadd.f32 %v691, 1.0
    %v715 = vlog2.pop %v714
    %v716 = vmul.f32 %v715, 0.6931472
    %v717 = vmul.f32 -0.5, %v691
    %v718 = vadd.f32 %v717, 1.0
    %v719 = vmul.f32 %v718, %v691
    %v720 = vand.u32 2147483647, %v691
    %vm721 = vcmp.lt.f32.partialorder %v720, 0.0004427343
    %v722 = vsel %vm721, %v719, %v716
    %v723 = vadd.f32 %v693, 1.0
    %v724 = vlog2.pop %v723
    %v725 = vmul.f32 %v724, 0.6931472
    %v726 = vmul.f32 -0.5, %v693
    %v727 = vadd.f32 %v726, 1.0
    %v728 = vmul.f32 %v727, %v693
    %v729 = vand.u32 2147483647, %v693
    %vm730 = vcmp.lt.f32.partialorder %v729, 0.0004427343
    %v731 = vsel %vm730, %v728, %v725
    %v732 = vadd.f32 %v695, 1.0
    %v733 = vlog2.pop %v732
    %v734 = vmul.f32 %v733, 0.6931472
    %v735 = vmul.f32 -0.5, %v695
    %v736 = vadd.f32 %v735, 1.0
    %v737 = vmul.f32 %v736, %v695
    %v738 = vand.u32 2147483647, %v695
    %vm739 = vcmp.lt.f32.partialorder %v738, 0.0004427343
    %v740 = vsel %vm739, %v737, %v734
    %v741 = vsub.f32 %v671, %v704
    %v742 = vsub.f32 %v672, %v713
    %v743 = vsub.f32 %v673, %v722
    %v744 = vsub.f32 %v674, %v731
    %v745 = vsub.f32 %v675, %v740
    %vm746 = vcmask 7168
    %v747 = vsel %vm746, %v741, 0.0
    %748 = vadd.xlane.f32.xlu0 %v747
    %v749 = vpop.xlane.xlu0 %748
    %v750 = vrot.slane %v749, 4
    %v751 = vadd.f32 %v749, %v750
    %v752 = vrot.slane %v751, 2
    %v753 = vadd.f32 %v751, %v752
    %v754 = vrot.slane %v753, 1
    %v755 = vadd.f32 %v753, %v754
    %s756 = vtos %v755
    %s757 = ssub.f32 0.0, %s756
    %v758 = vrcp.pop 8.0
    %s759 = vtos %v758
    %s760 = smul.f32 %s757, %s759
    %v761 = vsel %vm746, %v742, 0.0
    %v762 = vsel %vm746, %v743, 0.0
    %v763 = vadd.f32 %v761, %v762
    %v764 = vsel %vm746, %v744, 0.0
    %v765 = vadd.f32 %v763, %v764
    %v766 = vsel %vm746, %v745, 0.0
    %v767 = vadd.f32 %v765, %v766
    %768 = vadd.xlane.f32.xlu0 %v767
    %v769 = vpop.xlane.xlu0 %768
    %v770 = vrot.slane %v769, 4
    %v771 = vadd.f32 %v769, %v770
    %v772 = vrot.slane %v771, 2
    %v773 = vadd.f32 %v771, %v772
    %v774 = vrot.slane %v773, 1
    %v775 = vadd.f32 %v773, %v774
    %s776 = vtos %v775
    %s777 = ssub.f32 0.0, %s776
    %v778 = vrcp.pop 32.0
    %s779 = vtos %v778
    %s780 = smul.f32 %s777, %s779
    %s781 = sadd.f32 %s760, %s780
    %s782 = smul.f32 %s781, 0.5
    %s783 = scalar_lea.smem [#allocation2], 0
    %784 = sst [smem:[%s783]] %s782
    // Predicated region
    $region14: #{kg_function_forward.1} parent=1 // pred_check
      _
    $region15: #{kg_function_forward.1} parent=1 // pred_check_branch
      %786 = sbr.rel (0) target = $region17
    $region16: #{kg_function_forward.1} parent=1 // pred_region
      %s788 = ssub.s32 16, 16
      %789 = vsyncadd [#allocation3], %s788
      %792 = dma.smem_to_hbm [#allocation2], 16, %s3, [#allocation3]
    $region17: #{kg_function_forward.1} parent=1 // pred_fallthru
      _
    // Predicated region
    $region18: #{kg_function_forward.1} parent=1 // pred_check
      _
    $region19: #{kg_function_forward.1} parent=1 // pred_check_branch
      %794 = sbr.rel (0) target = $region21
    $region20: #{kg_function_forward.1} parent=1 // pred_region
      %795 = dma.done [#allocation3], 16
    $region21: #{kg_function_forward.1} parent=1 // pred_fallthru
      _
    %796 = sfence
    %797 = vsyncpa [#allocation3], 1

</llo_original>
